<compile_context>
chip_gen: v7x
topology: tpu7x:2x2x1
jax: 0.10.0
libtpu: 0.0.40
codegen_flags: <defaults>
</compile_context>

<pallas_src>
import functools

import jax
import jax.numpy as jnp
from jax.experimental import pallas as pl
from jax.experimental.pallas import tpu as pltpu

_LANE = 128
_SUBLANE = 8
_BLOCK_BUDGET_BYTES = 2 * 1024 * 1024            # per-block target (~85%+ of HBM roofline)
_MAX_SINGLE_PASS_BLOCK_BYTES = 4 * 1024 * 1024   # above this, switch to the two-pass path
_VMEM_LIMIT_BYTES = 32 * 1024 * 1024             # safe on v5e/v6e (128 MiB) and v7x (64 MiB)


def _round_up(n: int, m: int) -> int:
    return ((n + m - 1) // m) * m


# ---------------------------------------------------------------------------
# Single-pass kernel: one (bb, T, tc) block holds the full reduction axis.
# ---------------------------------------------------------------------------
def _instance_norm_kernel(x_ref, o_ref, *, eps: float, subtract_last: bool):
    # Block is (bb, T, tc); the time/reduction axis is axis -2.
    x = x_ref[...]
    T = x.shape[-2]
    f32 = jnp.float32

    if x.dtype == f32:
        # Two-pass stats inside the tile (best accuracy; tile is already f32).
        mean = jnp.mean(x, axis=-2, keepdims=True)                   # (bb, 1, tc)
        centered = x - mean
        # torch.std default is unbiased (correction=1): divide by T-1.
        # NOTE: T == 1 yields inf/NaN, same as torch.std(unbiased=True).
        var = jnp.sum(centered * centered, axis=-2, keepdims=True) / f32(T - 1)
        scale = jnp.sqrt(var) + f32(eps)                             # std + eps (eps OUTSIDE sqrt)
        inv = pl.reciprocal(scale, approx=False)                     # one EUP op per column
        if subtract_last:
            out = (x - x[..., T - 1 : T, :]) * inv
        else:
            out = centered * inv
    else:
        # bf16 / fp8 inputs: only the T-axis sums accumulate in f32; the
        # elementwise (x - center) * inv and the store stay in the native
        # dtype so the live tile footprint is not doubled by an f32 upcast.
        xf = x.astype(f32)
        s1 = jnp.sum(xf, axis=-2, keepdims=True)
        s2 = jnp.sum(xf * xf, axis=-2, keepdims=True)
        mean = s1 / f32(T)
        var = jnp.maximum((s2 - s1 * mean) / f32(T - 1), 0.0)
        scale = jnp.sqrt(var) + f32(eps)
        inv = pl.reciprocal(scale, approx=False).astype(x.dtype)
        center = x[..., T - 1 : T, :] if subtract_last else mean.astype(x.dtype)
        out = (x - center) * inv

    o_ref[...] = out.astype(o_ref.dtype)


def _pick_lane_tile(B: int, T: int, C: int, itemsize: int) -> int:
    """Lane-axis tile: full C if it fits in <=128 lanes, else a multiple of 128
    bounded by the per-block VMEM budget (for a single batch row)."""
    if C <= _LANE:
        return C                                   # full last dim (allowed even when < 128)
    by_budget = max(_LANE, (_BLOCK_BUDGET_BYTES // (T * itemsize)) // _LANE * _LANE)
    tc = min(_round_up(C, _LANE), by_budget)
    # v7x: if B == 1 the C axis is the only axis that can feed both
    # TensorCores -- make sure it has >= 2 grid steps.
    if B == 1 and tc >= _round_up(C, _LANE):
        tc = max(_LANE, _round_up(-(-C // 2), _LANE))
    return tc


def _pick_batch_tile(B: int, T: int, tc: int, C: int, itemsize: int) -> int:
    """Batch-pack rows per block up to the VMEM budget, keeping >= 2 grid steps
    when possible so both v7x TensorCores get work."""
    row_bytes = T * tc * itemsize
    bb = max(1, min(B, _BLOCK_BUDGET_BYTES // max(1, row_bytes)))
    if bb >= B and B >= 2 and pl.cdiv(C, tc) == 1:
        bb = (B + 1) // 2
    return bb


# ---------------------------------------------------------------------------
# Two-pass path for very long sequences (full-T block would not fit VMEM).
# ---------------------------------------------------------------------------
def _stats_kernel(x_ref, s1_ref, s2_ref, *, total_t: int):
    # Accumulate sum / sum-of-squares over the T grid axis (last axis, "arbitrary").
    @pl.when(pl.program_id(2) == 0)
    def _():
        s1_ref[...] = jnp.zeros_like(s1_ref)
        s2_ref[...] = jnp.zeros_like(s2_ref)

    x = x_ref[...].astype(jnp.float32)
    tt = x.shape[-2]
    if total_t % tt != 0:
        # Mask padded rows of the last partial T block out of the sums.
        row = jax.lax.broadcasted_iota(jnp.int32, x.shape, dimension=x.ndim - 2)
        valid = (pl.program_id(2) * tt + row) < total_t
        x = jnp.where(valid, x, 0.0)
    s1_ref[...] += jnp.sum(x, axis=-2, keepdims=True)
    s2_ref[...] += jnp.sum(x * x, axis=-2, keepdims=True)


def _normalize_kernel(x_ref, center_ref, inv_ref, o_ref):
    x = x_ref[...].astype(jnp.float32)
    o_ref[...] = ((x - center_ref[...]) * inv_ref[...]).astype(o_ref.dtype)


def _instance_norm_two_pass(x: jax.Array, *, eps: float, subtract_last: bool) -> jax.Array:
    """Stats pass + streaming normalize pass (~1.5x HBM traffic: 2 reads + 1 write).

    Used when a full-T block cannot fit the single-pass VMEM budget.
    """
    # TODO(synk): sum/sumsq variance is less robust than two-pass stats for data
    # with a very large mean; switch to a chunked Welford update if that shows up.
    B, T, C = x.shape
    itemsize = jnp.dtype(x.dtype).itemsize
    tc = C if C <= _LANE else min(_round_up(C, _LANE), 512)
    tt = max(_SUBLANE, (_BLOCK_BUDGET_BYTES // (tc * itemsize)) // _SUBLANE * _SUBLANE)
    tt = min(tt, _round_up(T, _SUBLANE))
    grid = (B, pl.cdiv(C, tc), pl.cdiv(T, tt))

    s1, s2 = pl.pallas_call(
        functools.partial(_stats_kernel, total_t=T),
        out_shape=(jax.ShapeDtypeStruct((B, 1, C), jnp.float32),
                   jax.ShapeDtypeStruct((B, 1, C), jnp.float32)),
        grid_spec=pl.GridSpec(
            grid=grid,
            in_specs=[pl.BlockSpec((1, tt, tc), lambda b, j, k: (b, k, j))],
            out_specs=(pl.BlockSpec((1, 1, tc), lambda b, j, k: (b, 0, j)),
                       pl.BlockSpec((1, 1, tc), lambda b, j, k: (b, 0, j))),
        ),
        compiler_params=pltpu.CompilerParams(
            dimension_semantics=("parallel", "parallel", "arbitrary"),
            vmem_limit_bytes=_VMEM_LIMIT_BYTES,
        ),
    )(x)

    # Per-(b, c) statistics are tiny -- finish them in plain XLA.
    mean = s1 / jnp.float32(T)
    var = jnp.maximum((s2 - s1 * mean) / jnp.float32(T - 1), 0.0)
    scale = jnp.sqrt(var) + jnp.float32(eps)
    inv = 1.0 / scale
    center = x[:, -1:, :].astype(jnp.float32) if subtract_last else mean

    return pl.pallas_call(
        _normalize_kernel,
        out_shape=jax.ShapeDtypeStruct((B, T, C), x.dtype),
        grid_spec=pl.GridSpec(
            grid=grid,
            in_specs=[pl.BlockSpec((1, tt, tc), lambda b, j, k: (b, k, j)),
                      pl.BlockSpec((1, 1, tc), lambda b, j, k: (b, 0, j)),
                      pl.BlockSpec((1, 1, tc), lambda b, j, k: (b, 0, j))],
            out_specs=pl.BlockSpec((1, tt, tc), lambda b, j, k: (b, k, j)),
        ),
        compiler_params=pltpu.CompilerParams(
            dimension_semantics=("parallel", "parallel", "parallel"),
            vmem_limit_bytes=_VMEM_LIMIT_BYTES,
        ),
    )(x, center, inv)


# ---------------------------------------------------------------------------
# Public wrapper
# ---------------------------------------------------------------------------
def instance_norm(x: jax.Array, *, eps: float = 1e-5, subtract_last: bool = False) -> jax.Array:
    """Pallas InstanceNorm forward, mode='norm'.  x: (B, T, C), reduce over T."""
    B, T, C = x.shape
    itemsize = jnp.dtype(x.dtype).itemsize

    # Large-T fallback: even a single-row, minimal-lane full-T block would blow
    # the single-pass budget -> use the two-pass (stats + normalize) pipeline.
    tc_min = C if C <= _LANE else _LANE
    if T * tc_min * itemsize > _MAX_SINGLE_PASS_BLOCK_BYTES:
        return _instance_norm_two_pass(x, eps=eps, subtract_last=subtract_last)

    tc = _pick_lane_tile(B, T, C, itemsize)
    bb = _pick_batch_tile(B, T, tc, C, itemsize)
    kernel = functools.partial(_instance_norm_kernel, eps=eps, subtract_last=subtract_last)

    return pl.pallas_call(
        kernel,
        out_shape=jax.ShapeDtypeStruct((B, T, C), x.dtype),
        grid_spec=pl.GridSpec(
            grid=(pl.cdiv(B, bb), pl.cdiv(C, tc)),
            in_specs=[pl.BlockSpec((bb, T, tc), lambda i, j: (i, 0, j))],
            out_specs=pl.BlockSpec((bb, T, tc), lambda i, j: (i, 0, j)),
        ),
        compiler_params=pltpu.CompilerParams(
            dimension_semantics=("parallel", "parallel"),
            vmem_limit_bytes=_VMEM_LIMIT_BYTES,
        ),
    )(x)


def _instance_norm_ref(x, *, eps=1e-5, subtract_last=False):
    # Pure-JAX reference mirroring the PyTorch module (unbiased std, eps outside sqrt).
    mean = jnp.mean(x, axis=1, keepdims=True)
    center = x[:, -1:, :] if subtract_last else mean
    std = jnp.sqrt(jnp.sum((x - mean) ** 2, axis=1, keepdims=True) / (x.shape[1] - 1))
    return (x - center) / (std + eps)


if __name__ == "__main__":
    key = jax.random.PRNGKey(0)
    ks = jax.random.split(key, 5)

    def check(out, x, sub_last, atol=1e-5, rtol=1e-5):
        ref = _instance_norm_ref(x.astype(jnp.float32), eps=1e-5, subtract_last=sub_last)
        assert out.shape == x.shape and out.dtype == x.dtype
        assert jnp.allclose(out.astype(jnp.float32), ref, atol=atol, rtol=rtol), (
            f"mismatch: shape={x.shape} dtype={x.dtype} subtract_last={sub_last}")

    # Case 1: C=32 (< 128 lanes) -- no wrapper transposes, batch-packed blocks.
    x = jax.random.normal(ks[0], (2, 8, 32), dtype=jnp.float32)
    for sub_last in (False, True):
        out = jax.block_until_ready(instance_norm(x, eps=1e-5, subtract_last=sub_last))
        check(out, x, sub_last)

    # Case 2: C=128 -- lane-dense path.
    xw = jax.random.normal(ks[1], (2, 8, 128), dtype=jnp.float32)
    outw = jax.block_until_ready(instance_norm(xw, eps=1e-5, subtract_last=False))
    check(outw, xw, False)

    # Case 3: C=160 (not a multiple of 128) -- partial lane blocks are masked
    # on writeback; per-column independence keeps valid columns correct.
    xo = jax.random.normal(ks[2], (2, 8, 160), dtype=jnp.float32)
    outo = jax.block_until_ready(instance_norm(xo, eps=1e-5, subtract_last=False))
    check(outo, xo, False)

    # Case 4: bf16 -- native-dtype elementwise path (looser tolerance).
    xb = jax.random.normal(ks[3], (2, 8, 32), dtype=jnp.bfloat16)
    outb = jax.block_until_ready(instance_norm(xb, eps=1e-5, subtract_last=False))
    check(outb, xb, False, atol=5e-2, rtol=5e-2)

    # Case 5: two-pass (large-T fallback) exercised directly at a small shape,
    # including a T that is not a multiple of the sublane tile.
    xt = jax.random.normal(ks[4], (2, 10, 32), dtype=jnp.float32)
    for sub_last in (False, True):
        outt = jax.block_until_ready(
            _instance_norm_two_pass(xt, eps=1e-5, subtract_last=sub_last))
        check(outt, xt, sub_last)

    # TODO(synk): mode='denorm' needs the stateful center/scale saved from a
    # prior 'norm' call; expose them from the wrapper if that path is needed.
    print("KERNEL_OK")
</pallas_src>

<mosaic_0001>
module attributes {stable_mosaic.version = 11 : i64} {
  func.func @_instance_norm_kernel(%arg0: i32, %arg1: i32, %arg2: memref<1x8x32xf32, #tpu.memory_space<vmem>>, %arg3: memref<1x8x32xf32, #tpu.memory_space<vmem>>) attributes {dimension_semantics = [#tpu.dimension_semantics<parallel>, #tpu.dimension_semantics<parallel>], iteration_bounds = array<i64: 2, 1>, scalar_prefetch = 0 : i64, scratch_operands = 0 : i64, tpu.core_type = #tpu.core_type<tc>, window_params = [{transform_indices = @transform_0, window_bounds = array<i64: 1, 8, 32>}, {transform_indices = @transform_1, window_bounds = array<i64: 1, 8, 32>}]} {
    %c0 = arith.constant 0 : index
    %c0_0 = arith.constant 0 : index
    %c0_1 = arith.constant 0 : index
    %0 = vector.load %arg2[%c0, %c0_0, %c0_1] : memref<1x8x32xf32, #tpu.memory_space<vmem>>, vector<1x8x32xf32>
    %cst = arith.constant dense<0.000000e+00> : vector<1x32xf32>
    %1 = vector.multi_reduction <add>, %0, %cst [1] : vector<1x8x32xf32> to vector<1x32xf32>
    %2 = vector.shape_cast %1 : vector<1x32xf32> to vector<1x1x32xf32>
    %cst_2 = arith.constant 8.000000e+00 : f32
    %3 = vector.broadcast %cst_2 : f32 to vector<1x1x32xf32>
    %4 = arith.divf %2, %3 : vector<1x1x32xf32>
    %5 = vector.broadcast %4 : vector<1x1x32xf32> to vector<1x8x32xf32>
    %6 = arith.subf %0, %5 : vector<1x8x32xf32>
    %7 = arith.mulf %6, %6 : vector<1x8x32xf32>
    %cst_3 = arith.constant dense<0.000000e+00> : vector<1x32xf32>
    %8 = vector.multi_reduction <add>, %7, %cst_3 [1] : vector<1x8x32xf32> to vector<1x32xf32>
    %9 = vector.shape_cast %8 : vector<1x32xf32> to vector<1x1x32xf32>
    %cst_4 = arith.constant 7.000000e+00 : f32
    %10 = vector.broadcast %cst_4 : f32 to vector<1x1x32xf32>
    %11 = arith.divf %9, %10 : vector<1x1x32xf32>
    %12 = math.sqrt %11 : vector<1x1x32xf32>
    %cst_5 = arith.constant 9.99999974E-6 : f32
    %13 = vector.broadcast %cst_5 : f32 to vector<1x1x32xf32>
    %14 = arith.addf %12, %13 : vector<1x1x32xf32>
    %15 = tpu.reciprocal %14 : vector<1x1x32xf32> -> vector<1x1x32xf32>
    %16 = vector.broadcast %15 : vector<1x1x32xf32> to vector<1x8x32xf32>
    %17 = arith.mulf %6, %16 : vector<1x8x32xf32>
    %c0_6 = arith.constant 0 : index
    %c0_7 = arith.constant 0 : index
    %c0_8 = arith.constant 0 : index
    %18 = vector.load %arg3[%c0_6, %c0_7, %c0_8] : memref<1x8x32xf32, #tpu.memory_space<vmem>>, vector<1x8x32xf32>
    tpu.vector_store %arg3[%c0_6, %c0_7, %c0_8], %17 {strides = array<i32>} : memref<1x8x32xf32, #tpu.memory_space<vmem>>, vector<1x8x32xf32>,
    return
  }
  func.func @transform_0(%arg0: i32, %arg1: i32) -> (i32, i32, i32) {
    %c0_i32 = arith.constant 0 : i32
    %c0_i32_0 = arith.constant 0 : i32
    return %arg0, %c0_i32, %arg1 : i32, i32, i32
  }
  func.func @transform_1(%arg0: i32, %arg1: i32) -> (i32, i32, i32) {
    %c0_i32 = arith.constant 0 : i32
    %c0_i32_0 = arith.constant 0 : i32
    return %arg0, %c0_i32, %arg1 : i32, i32, i32
  }
}

</mosaic_0001>

<llo_original>
// kernel: tpu_custom_call.1
$region0: #{tpu_custom_call.1}
  #allocation0 [shape = 'u32[]', space=smem, size = 0x4, offset = 0x4, fixed_abs, tag = 'smem constant byte address 0x4 - core index']
  #allocation1 [shape = 'u32[144,128]{1,0:T(1,128)}', space=vmem, size = 0x12000, scoped, tag = 'internal scratch']
  %s0 = inlined_call_operand.hbm [shape: f32[2,8,32], index: 0, kind: input, shape index: {}]
  %s1 = inlined_call_operand.hbm [shape: f32[2,8,32], index: 1, kind: output, shape index: {}]
  %s2 = sld [smem:[#allocation0]]
  $region41: #{tpu_custom_call.1} parent=0
    _
  %s4 = ssub.s32 1, %s2
  %s5 = scalar_select 0, %s4, %s2
  $region1: #{tpu_custom_call.1} parent=0
    #allocation2 [shape = 'u8[8192]{0}', space=vmem, size = 0x2000, scoped, tag = 'input window, operand 0']
    #allocation3 [shape = 's32[2]{0}', space=sflag, size = 0x8, scoped, tag = 'scoped memory for tpu_custom_call.1']
    #allocation4 [shape = 's32[2]{0}', space=sflag, size = 0x8, scoped, tag = 'scoped memory for tpu_custom_call.1']
    #allocation5 [shape = 'u8[8192]{0}', space=vmem, size = 0x2000, scoped, tag = 'output window, operand 0']
    %6 = vsyncpa [#allocation3], 0
    %s7 = scalar_lea.sflag [#allocation3], 1
    %8 = vsyncpa %s7, 0
    %9 = vsyncpa [#allocation4], 0
    %s10 = scalar_lea.sflag [#allocation4], 1
    %11 = vsyncpa %s10, 0
    loop: start=0, step=1, limit=4
    $region2: #{tpu_custom_call.1} parent=1 // loop_pre_header
      _
    $region3: #{tpu_custom_call.1} parent=1 // loop_header
      %s13 = sphi 0, %s17
      %p14 = scmp.ge.s32.totalorder %s13, 4
      %s20 = sphi 0, %s32
      %s21 = sphi 0, %s28
      %s22 = sphi 0, %s20
      %s23 = sphi 0, %s21
      %s24 = sphi 0, %s22
      %s25 = sphi 0, %s23
      %s37 = sphi 0, %s39
      %s40 = sphi 0, %s37
      %s41 = sphi 0, %s40
      %s57 = sphi 0, %s41
      %s65 = sphi 0, %s67
      %s68 = sphi 0, %s65
      %s69 = sphi 0, %s68
      %s85 = sphi 0, %s69
    $region4: #{tpu_custom_call.1} parent=1 // loop_header_branch
      %16 = sbr.rel (%p14) target = $region8
    $region5: #{tpu_custom_call.1} parent=1 // loop_body
      %s18 = ssub.s32 %s13, 1
      %s19 = ssub.s32 %s13, 2
      %s26 = sadd.s32 1, %s21
      %p27 = scmp.ge.s32.totalorder %s26, 1
      %s28 = scalar_select %p27, 0, %s26
      %s29 = sadd.s32 1, %s20
      %s30 = scalar_select %p27, %s29, %s20
      %p31 = scmp.ge.s32.totalorder %s30, 2
      %s32 = scalar_select %p31, 0, %s30
      %s33 = ssub.s32 %s20, %s32
      %s34 = ssub.s32 %s21, %s28
      %s35 = sor.u32 %s33, %s34
      %p36 = scmp.eq.s32.totalorder %s35, 0
      %s38 = sadd.s32 %s37, 1
      %s39 = scalar_select %p36, %s37, %s38
      %p42 = pneg %p36
      %p43 = scmp.eq.s32.totalorder %s13, 1
      %p44 = por %p42, %p43
      %p45 = scmp.ne.s32.totalorder %s37, %s40
      %p46 = scmp.eq.s32.totalorder %s13, 0
      %p47 = por %p45, %p46
      %p48 = scmp.ne.s32.totalorder %s37, %s40
      %p49 = scmp.eq.s32.totalorder %s18, 1
      %p50 = por %p48, %p49
      %p51 = scmp.ne.s32.totalorder %s40, %s41
      %p52 = scmp.eq.s32.totalorder %s18, 0
      %p53 = por %p51, %p52
      %p54 = scmp.ne.s32.totalorder %s40, %s41
      %p55 = scmp.eq.s32.totalorder %s19, 1
      %p56 = por %p54, %p55
      %p58 = scmp.ne.s32.totalorder %s41, %s57
      %p59 = scmp.eq.s32.totalorder %s19, 0
      %p60 = por %p58, %p59
      %s61 = ssub.s32 %s20, %s32
      %s62 = ssub.s32 %s21, %s28
      %s63 = sor.u32 %s61, %s62
      %p64 = scmp.eq.s32.totalorder %s63, 0
      %s66 = sadd.s32 %s65, 1
      %s67 = scalar_select %p64, %s65, %s66
      %p70 = pneg %p64
      %p71 = scmp.eq.s32.totalorder %s13, 1
      %p72 = por %p70, %p71
      %p73 = scmp.ne.s32.totalorder %s65, %s68
      %p74 = scmp.eq.s32.totalorder %s13, 0
      %p75 = por %p73, %p74
      %p76 = scmp.ne.s32.totalorder %s65, %s68
      %p77 = scmp.eq.s32.totalorder %s18, 1
      %p78 = por %p76, %p77
      %p79 = scmp.ne.s32.totalorder %s68, %s69
      %p80 = scmp.eq.s32.totalorder %s18, 0
      %p81 = por %p79, %p80
      %p82 = scmp.ne.s32.totalorder %s68, %s69
      %p83 = scmp.eq.s32.totalorder %s19, 1
      %p84 = por %p82, %p83
      %p86 = scmp.ne.s32.totalorder %s69, %s85
      %p87 = scmp.eq.s32.totalorder %s19, 0
      %p88 = por %p86, %p87
      %p89 = scmp.le.s32.totalorder 1, %s13
      %p90 = scmp.lt.s32.totalorder %s13, 3
      %p91 = pnand %p89, %p90
      %p92 = pneg %p91
      // Predicated region
      $region9: #{tpu_custom_call.1} parent=5 // pred_check
        _
      $region10: #{tpu_custom_call.1} parent=5 // pred_check_branch
        %94 = sbr.rel (%p91) target = $region12
      $region11: #{tpu_custom_call.1} parent=5 // pred_region
        %s95 = ssub.s32 %s13, 1
      $region12: #{tpu_custom_call.1} parent=5 // pred_fallthru
        _
      %p96 = scmp.lt.s32.totalorder %s13, 2
      // Predicated region
      $region13: #{tpu_custom_call.1} parent=5 // pred_check
        %p97 = pneg %p96
      $region14: #{tpu_custom_call.1} parent=5 // pred_check_branch
        %99 = sbr.rel (%p97) target = $region16
      $region15: #{tpu_custom_call.1} parent=5 // pred_region
        // Predicated region
        $region17: #{tpu_custom_call.1} parent=15 // pred_check
          %p100 = pneg %p47
        $region18: #{tpu_custom_call.1} parent=15 // pred_check_branch
          %102 = sbr.rel (%p100) target = $region20
        $region19: #{tpu_custom_call.1} parent=15 // pred_region
          %s103 = sand.u32 %s37, 1
          %s104 = scalar_lea.sflag [#allocation3], %s103
          %s105 = sand.u32 %s37, 1
          %s106 = smul.addr %s105, 8
          %s107 = scalar_lea.vmem [#allocation2], %s106
          %s109 = ssub.s32 128, 128
          %110 = vsyncadd %s104, %s109
          %s111 = sadd.s32 %s21, %s20
          %s112 = smul.addr %s111, 128
          %s113 = scalar_lea.hbm %s0, %s112
          %s115 = sshll.u32 %s107, 4
          %s116 = int_to_ptr.vmem [resolvable:$true] %s115
          %118 = dma.hbm_to_vmem [thread:$0]  %s113, 128, %s116, %s104
        $region20: #{tpu_custom_call.1} parent=15 // pred_fallthru
          _
      $region16: #{tpu_custom_call.1} parent=5 // pred_fallthru
        _
      %p119 = scmp.le.s32.totalorder 1, %s13
      %p120 = scmp.lt.s32.totalorder %s13, 3
      %p121 = pnand %p119, %p120
      %p122 = pneg %p121
      // Predicated region
      $region21: #{tpu_custom_call.1} parent=5 // pred_check
        _
      $region22: #{tpu_custom_call.1} parent=5 // pred_check_branch
        %124 = sbr.rel (%p121) target = $region24
      $region23: #{tpu_custom_call.1} parent=5 // pred_region
        %s125 = ssub.s32 %s13, 1
        %s126 = sand.u32 %s40, 1
        %s127 = scalar_lea.sflag [#allocation3], %s126
        %s128 = sand.u32 %s40, 1
        %s129 = smul.addr %s128, 8
        %s130 = scalar_lea.vmem [#allocation2], %s129
        // Predicated region
        $region25: #{tpu_custom_call.1} parent=23 // pred_check
          %p131 = pneg %p53
        $region26: #{tpu_custom_call.1} parent=23 // pred_check_branch
          %133 = sbr.rel (%p131) target = $region28
        $region27: #{tpu_custom_call.1} parent=23 // pred_region
          %134 = dma.done %s127, 128
        $region28: #{tpu_custom_call.1} parent=23 // pred_fallthru
          _
        %s135 = sand.u32 %s40, 1
        %s136 = scalar_lea.sflag [#allocation3], %s135
        %s137 = sand.u32 %s40, 1
        %s138 = smul.addr %s137, 8
        %s139 = scalar_lea.vmem [#allocation2], %s138
        %p140 = pneg %p53
        %p141 = pneg %p50
        %p142 = pneg %p81
        %p143 = pneg %p78
        %s144 = sand.u32 %s68, 1
        %s145 = scalar_lea.sflag [#allocation4], %s144
        %s146 = sand.u32 %s68, 1
        %s147 = smul.addr %s146, 8
        %s148 = scalar_lea.vmem [#allocation5], %s147
        %v149 = vld [vmem:[%s130] sm:$0xff]
        %vm150 = vcmask 261120
        %v151 = vsel %vm150, %v149, 0.0
        %v152 = vrot.slane %v151, 4
        %v153 = vadd.f32 %v151, %v152
        %v154 = vrot.slane %v153, 2
        %v155 = vadd.f32 %v153, %v154
        %v156 = vrot.slane %v155, 1
        %v157 = vadd.f32 %v155, %v156
        %v158 = vrcp.pop 8.0
        %v159 = vmul.f32 %v157, %v158
        %v160 = vsub.f32 %v149, %v159
        %v161 = vmul.f32 %v160, %v160
        %v162 = vsel %vm150, %v161, 0.0
        %v163 = vrot.slane %v162, 4
        %v164 = vadd.f32 %v162, %v163
        %v165 = vrot.slane %v164, 2
        %v166 = vadd.f32 %v164, %v165
        %v167 = vrot.slane %v166, 1
        %v168 = vadd.f32 %v166, %v167
        %v169 = vrcp.pop 7.0
        %v170 = vmul.f32 %v168, %v169
        %v171 = vrsqrt.pop %v170
        %v172 = vmul.f32 %v170, %v171
        %vm173 = vcmp.eq.f32.partialorder %v170, inf
        %v174 = vsel %vm173, %v170, %v172
        %vm175 = vcmp.eq.f32.partialorder %v170, 0.0
        %v176 = vand.u32 %v170, 2147483648
        %v177 = vsel %vm175, %v176, %v174
        %v178 = vadd.f32 %v177, 1e-05
        %v179 = vrcp.pop %v178
        %v180 = vmul.f32 %v160, %v179
        %181 = vst.msk [vmem:[%s148] sm:$0xff] %vm150, %v180
        %s182 = sand.u32 %s68, 1
        %s183 = scalar_lea.sflag [#allocation4], %s182
        %s184 = sand.u32 %s68, 1
        %s185 = smul.addr %s184, 8
        %s186 = scalar_lea.vmem [#allocation5], %s185
        // Predicated region
        $region29: #{tpu_custom_call.1} parent=23 // pred_check
          %p187 = pneg %p78
        $region30: #{tpu_custom_call.1} parent=23 // pred_check_branch
          %189 = sbr.rel (%p187) target = $region32
        $region31: #{tpu_custom_call.1} parent=23 // pred_region
          %s191 = ssub.s32 128, 128
          %192 = vsyncadd %s183, %s191
          %s193 = sadd.s32 %s23, %s22
          %s194 = smul.addr %s193, 128
          %s195 = scalar_lea.hbm %s1, %s194
          %s197 = sshll.u32 %s186, 4
          %s198 = int_to_ptr.vmem [resolvable:$true] %s197
          %200 = dma.vmem_to_hbm [thread:$0]  %s198, 128, %s195, %s183
        $region32: #{tpu_custom_call.1} parent=23 // pred_fallthru
          _
      $region24: #{tpu_custom_call.1} parent=5 // pred_fallthru
        _
      %p201 = scmp.le.s32.totalorder 2, %s13
      // Predicated region
      $region33: #{tpu_custom_call.1} parent=5 // pred_check
        %p202 = pneg %p201
      $region34: #{tpu_custom_call.1} parent=5 // pred_check_branch
        %204 = sbr.rel (%p202) target = $region36
      $region35: #{tpu_custom_call.1} parent=5 // pred_region
        %s205 = ssub.s32 %s13, 2
        // Predicated region
        $region37: #{tpu_custom_call.1} parent=35 // pred_check
          %p206 = pneg %p84
        $region38: #{tpu_custom_call.1} parent=35 // pred_check_branch
          %208 = sbr.rel (%p206) target = $region40
        $region39: #{tpu_custom_call.1} parent=35 // pred_region
          %s209 = sand.u32 %s69, 1
          %s210 = scalar_lea.sflag [#allocation4], %s209
          %s211 = sand.u32 %s69, 1
          %s212 = smul.addr %s211, 8
          %s213 = scalar_lea.vmem [#allocation5], %s212
          %214 = dma.done %s210, 128
        $region40: #{tpu_custom_call.1} parent=35 // pred_fallthru
          _
      $region36: #{tpu_custom_call.1} parent=5 // pred_fallthru
        _
    $region6: #{tpu_custom_call.1} parent=1 // loop_footer
      %s17 = sadd.s32 1, %s13
    $region7: #{tpu_custom_call.1} parent=1 // loop_footer_branch
      %12 = sbr.rel target = $region3
    $region8: #{tpu_custom_call.1} parent=1 // loop_exit
      _
    %215 = vsyncpa [#allocation3], 1
    %s216 = scalar_lea.sflag [#allocation3], 1
    %217 = vsyncpa %s216, 1
    %218 = vsyncpa [#allocation4], 1
    %s219 = scalar_lea.sflag [#allocation4], 1
    %220 = vsyncpa %s219, 1

</llo_original>
